<compile_context>
chip_gen: v6e
topology: v6e:2x2x1
jax: 0.10.0
libtpu: 0.0.40
codegen_flags: <defaults>
</compile_context>

<pallas_src>
import functools

import jax
import jax.numpy as jnp
from jax.experimental import pallas as pl
from jax.experimental.pallas import tpu as pltpu


def _round_up(a, b):
    return (a + b - 1) // b * b


def _sublane_multiple(dtype):
    bits = jnp.dtype(dtype).itemsize * 8
    return max(8, 256 // bits)  # 8 for f32, 16 for bf16, 32 for 8-bit types


def _ff_kernel(x_ref, w_ref, g_ref, o_ref, *, layer_norm, residual, eps):
    x_raw = x_ref[...]                                    # (tm, d_in), input dtype
    if layer_norm:
        xf = x_raw.astype(jnp.float32)
        mean = jnp.mean(xf, axis=-1, keepdims=True)
        var = jnp.mean(jnp.square(xf - mean), axis=-1, keepdims=True)
        xn = (xf - mean) * jax.lax.rsqrt(var + eps)
        xn = xn * g_ref[...].astype(jnp.float32)          # (1, d_in) broadcast; no bias
        x_mm = xn.astype(w_ref.dtype)                     # MXU-native operand dtype
    else:
        x_mm = x_raw.astype(w_ref.dtype)

    # MXU matmul with f32 accumulation; operands stay in the weight dtype (bf16 default).
    y = jnp.dot(x_mm, w_ref[...], preferred_element_type=jnp.float32)  # (tm, tn) f32
    y = jax.nn.sigmoid(y)                                 # EUP, f32

    if residual:                                          # residual is the pre-LayerNorm x
        tn = o_ref.shape[-1]
        if x_ref.shape[-1] == tn:
            res = x_raw.astype(jnp.float32)
        else:
            # N-tiled output: take the matching column slice of the resident x tile.
            j = pl.program_id(1)
            start = j * tn
            if tn % 128 == 0:
                start = pl.multiple_of(start, 128)
            res = x_ref[:, pl.ds(start, tn)].astype(jnp.float32)
        y = y + res

    o_ref[...] = y.astype(o_ref.dtype)


def feed_forward(x, w_t, gamma=None, *, layer_norm=False, residual=True, eps=1e-6,
                 tile_rows=512, tile_cols=512, matmul_dtype=jnp.bfloat16):
    """x: (..., d_in); w_t: (d_in, d_out) (= torch weight transposed); gamma: (1, d_in)."""
    d_in, d_out = w_t.shape
    orig_shape = x.shape
    x2 = x.reshape(-1, d_in)
    n = x2.shape[0]
    out_dtype = x.dtype

    residual = residual and (d_in == d_out)   # matches: residual = residual and d_in == d_out

    if gamma is None:
        gamma = jnp.ones((1, d_in), dtype=jnp.float32)
    gamma = gamma.reshape(1, d_in).astype(jnp.float32)

    # Weight in the matmul operand dtype (bf16 by default -> halves HBM/VMEM traffic).
    w = w_t.astype(matmul_dtype)

    # Row tile: as large as requested, respecting the sublane packing of x / out dtype.
    sub = max(_sublane_multiple(x2.dtype), _sublane_multiple(out_dtype))
    tm = max(sub, min(tile_rows, _round_up(n, sub)))
    tm = _round_up(tm, sub)
    n_pad = _round_up(n, tm)
    if n_pad != n:
        x2 = jnp.pad(x2, ((0, n_pad - n), (0, 0)))

    # Column tile: a multiple of 128 that divides d_out, else the full d_out.
    if d_out % 128 != 0:
        tn = d_out
    else:
        tn = min(tile_cols, d_out)
        tn = max(128, (tn // 128) * 128)
        while d_out % tn:
            tn -= 128

    grid = (n_pad // tm, d_out // tn)

    # VMEM budget: double-buffered x / w / gamma / out tiles, with headroom, capped at
    # 64 MiB so the same configuration stays safe on v7x (smaller physical VMEM).
    x_bytes = tm * d_in * x2.dtype.itemsize
    w_bytes = d_in * tn * w.dtype.itemsize
    g_bytes = d_in * 4
    o_bytes = tm * tn * jnp.dtype(out_dtype).itemsize
    needed = 2 * (x_bytes + w_bytes + g_bytes + o_bytes)
    vmem_limit = int(min(64 << 20, max(2 * needed + (4 << 20), 32 << 20)))

    cost = pl.CostEstimate(
        flops=int(2 * n_pad * d_in * d_out),
        transcendentals=int(n_pad * d_out),
        bytes_accessed=int(n_pad * d_in * x2.dtype.itemsize
                           + grid[0] * d_in * d_out * w.dtype.itemsize
                           + n_pad * d_out * jnp.dtype(out_dtype).itemsize),
    )

    kernel = functools.partial(
        _ff_kernel, layer_norm=layer_norm, residual=residual, eps=eps)

    out = pl.pallas_call(
        kernel,
        out_shape=jax.ShapeDtypeStruct((n_pad, d_out), out_dtype),
        grid_spec=pltpu.PrefetchScalarGridSpec(
            num_scalar_prefetch=0,
            grid=grid,
            in_specs=[
                pl.BlockSpec((tm, d_in), lambda i, j: (i, 0)),   # x row tile (full d_in)
                pl.BlockSpec((d_in, tn), lambda i, j: (0, j)),   # weight column tile
                pl.BlockSpec((1, d_in), lambda i, j: (0, 0)),    # layernorm gamma
            ],
            out_specs=pl.BlockSpec((tm, tn), lambda i, j: (i, j)),
        ),
        compiler_params=pltpu.CompilerParams(
            dimension_semantics=("parallel", "parallel"),
            vmem_limit_bytes=vmem_limit),
        cost_estimate=cost,
    )(x2, w, gamma)

    if n_pad != n:
        out = out[:n]
    return out.reshape(*orig_shape[:-1], d_out)


def feed_forward_ref(x, w_t, gamma=None, *, layer_norm=False, eps=1e-6, residual=True):
    d_in, d_out = w_t.shape
    if gamma is None:
        gamma = jnp.ones((1, d_in), dtype=jnp.float32)
    res = x
    if layer_norm:
        mean = jnp.mean(x, axis=-1, keepdims=True)
        var = jnp.mean((x - mean) ** 2, axis=-1, keepdims=True)
        x = (x - mean) / jnp.sqrt(var + eps) * gamma.reshape(-1)
    y = jax.nn.sigmoid(x @ w_t)
    if residual and d_in == d_out:
        y = y + res
    return y


if __name__ == "__main__":
    key = jax.random.PRNGKey(0)
    kx, kw, kx2, kw2, kx3, kw3 = jax.random.split(key, 6)

    # Small shapes consistent with the module: batch=2, seq=8, d_in=d_out=32.
    B, T, D = 2, 8, 32
    x = jax.random.normal(kx, (B, T, D), dtype=jnp.float32)
    w_t = jax.random.normal(kw, (D, D), dtype=jnp.float32) * (1.0 / jnp.sqrt(D))
    gamma = jnp.ones((1, D), dtype=jnp.float32)

    # 1) Default module config (no layer norm, residual) — exact f32 matmul path.
    out = jax.block_until_ready(feed_forward(x, w_t, gamma, matmul_dtype=jnp.float32))
    ref = feed_forward_ref(x, w_t, gamma)
    assert jnp.allclose(out, ref, atol=1e-5, rtol=1e-5)

    # 2) Pre-LayerNorm path (layer_norm=True, norm_first=True) — exact f32 matmul.
    out_ln = jax.block_until_ready(
        feed_forward(x, w_t, gamma, layer_norm=True, matmul_dtype=jnp.float32))
    ref_ln = feed_forward_ref(x, w_t, gamma, layer_norm=True)
    assert jnp.allclose(out_ln, ref_ln, atol=1e-5, rtol=1e-5)

    # 3) Default performance path: bf16 matmul operands, f32 accumulation (looser tol).
    out_bf = jax.block_until_ready(feed_forward(x, w_t, gamma, layer_norm=True))
    assert jnp.allclose(out_bf, ref_ln, atol=2e-2, rtol=2e-2)

    # 4) Non-square (residual disabled) + ragged row count (internal padding).
    D2 = 64
    x_ns = jax.random.normal(kx2, (3, 7, D), dtype=jnp.float32)          # 21 rows
    w_ns = jax.random.normal(kw2, (D, D2), dtype=jnp.float32) * (1.0 / jnp.sqrt(D))
    out_ns = jax.block_until_ready(feed_forward(x_ns, w_ns, matmul_dtype=jnp.float32))
    ref_ns = feed_forward_ref(x_ns, w_ns)
    assert jnp.allclose(out_ns, ref_ns, atol=1e-5, rtol=1e-5)

    # 5) Exercise the 2-D grid and the N-tiled residual slice path (modest size).
    D3, ROWS = 256, 64
    x_big = jax.random.normal(kx3, (ROWS, D3), dtype=jnp.float32)
    w_big = jax.random.normal(kw3, (D3, D3), dtype=jnp.float32) * (1.0 / jnp.sqrt(D3))
    g_big = jnp.ones((1, D3), dtype=jnp.float32)
    out_big = jax.block_until_ready(
        feed_forward(x_big, w_big, g_big, layer_norm=True,
                     tile_rows=32, tile_cols=128, matmul_dtype=jnp.float32))
    ref_big = feed_forward_ref(x_big, w_big, g_big, layer_norm=True)
    assert jnp.allclose(out_big, ref_big, atol=1e-4, rtol=1e-4)

    print("KERNEL_OK")
</pallas_src>

<mosaic_0001>
module attributes {stable_mosaic.version = 11 : i64} {
  func.func @_ff_kernel(%arg0: i32, %arg1: i32, %arg2: memref<16x32xf32, #tpu.memory_space<vmem>>, %arg3: memref<32x32xf32, #tpu.memory_space<vmem>>, %arg4: memref<1x32xf32, #tpu.memory_space<vmem>>, %arg5: memref<16x32xf32, #tpu.memory_space<vmem>>) attributes {dimension_semantics = [#tpu.dimension_semantics<parallel>, #tpu.dimension_semantics<parallel>], iteration_bounds = array<i64: 1, 1>, scalar_prefetch = 0 : i64, scratch_operands = 0 : i64, tpu.core_type = #tpu.core_type<tc>, window_params = [{transform_indices = @transform_0, window_bounds = array<i64: 16, 32>}, {transform_indices = @transform_1, window_bounds = array<i64: 32, 32>}, {pipeline_mode = #tpu.pipeline_mode<synchronous>, transform_indices = @transform_2, window_bounds = array<i64: 1, 32>}, {transform_indices = @transform_3, window_bounds = array<i64: 16, 32>}]} {
    %c0 = arith.constant 0 : index
    %c0_0 = arith.constant 0 : index
    %0 = vector.load %arg2[%c0, %c0_0] : memref<16x32xf32, #tpu.memory_space<vmem>>, vector<16x32xf32>
    %c0_1 = arith.constant 0 : index
    %c0_2 = arith.constant 0 : index
    %1 = vector.load %arg3[%c0_1, %c0_2] : memref<32x32xf32, #tpu.memory_space<vmem>>, vector<32x32xf32>
    %cst = arith.constant dense<0.000000e+00> : vector<16x32xf32>
    %2 = tpu.matmul %0, %1, %cst {dimension_numbers = #tpu.dot_dimension_numbers<[1], [0], [0], [1], [0, 0, 1, 1], [], []>} : vector<16x32xf32>, vector<32x32xf32>, vector<16x32xf32> -> vector<16x32xf32>
    %3 = arith.negf %2 : vector<16x32xf32>
    %4 = math.exp %3 : vector<16x32xf32>
    %cst_3 = arith.constant 1.000000e+00 : f32
    %5 = vector.broadcast %cst_3 : f32 to vector<16x32xf32>
    %6 = arith.addf %5, %4 : vector<16x32xf32>
    %7 = arith.divf %5, %6 : vector<16x32xf32>
    %8 = arith.addf %7, %0 : vector<16x32xf32>
    %c0_4 = arith.constant 0 : index
    %c0_5 = arith.constant 0 : index
    %9 = vector.load %arg5[%c0_4, %c0_5] : memref<16x32xf32, #tpu.memory_space<vmem>>, vector<16x32xf32>
    tpu.vector_store %arg5[%c0_4, %c0_5], %8 {strides = array<i32>} : memref<16x32xf32, #tpu.memory_space<vmem>>, vector<16x32xf32>,
    return
  }
  func.func @transform_0(%arg0: i32, %arg1: i32) -> (i32, i32) {
    %c0_i32 = arith.constant 0 : i32
    %c0_i32_0 = arith.constant 0 : i32
    return %arg0, %c0_i32 : i32, i32
  }
  func.func @transform_1(%arg0: i32, %arg1: i32) -> (i32, i32) {
    %c0_i32 = arith.constant 0 : i32
    %c0_i32_0 = arith.constant 0 : i32
    return %c0_i32, %arg1 : i32, i32
  }
  func.func @transform_2(%arg0: i32, %arg1: i32) -> (i32, i32) {
    %c0_i32 = arith.constant 0 : i32
    %c0_i32_0 = arith.constant 0 : i32
    %c0_i32_1 = arith.constant 0 : i32
    return %c0_i32, %c0_i32_0 : i32, i32
  }
  func.func @transform_3(%arg0: i32, %arg1: i32) -> (i32, i32) {
    %c0_i32 = arith.constant 0 : i32
    return %arg0, %arg1 : i32, i32
  }
}

</mosaic_0001>

<llo_original>
// kernel: tpu_custom_call.1
$region0: #{tpu_custom_call.1}
  #allocation0 [shape = 'u32[]', space=smem, size = 0x4, offset = 0x4, fixed_abs, tag = 'smem constant byte address 0x4 - core index']
  #allocation1 [shape = 'u32[144,128]{1,0:T(1,128)}', space=vmem, size = 0x12000, scoped, tag = 'internal scratch']
  %s0 = inlined_call_operand.hbm [shape: f32[16,32], index: 0, kind: input, shape index: {}]
  %s1 = inlined_call_operand.hbm [shape: f32[32,32], index: 1, kind: input, shape index: {}]
  %s2 = inlined_call_operand.vmem [shape: f32[1,32], index: 2, kind: input, shape index: {}]
  %s3 = inlined_call_operand.hbm [shape: f32[16,32], index: 3, kind: output, shape index: {}]
  %s4 = sld [smem:[#allocation0]]
  $region30: #{tpu_custom_call.1} parent=0
    _
  %s6 = ssub.s32 1, %s4
  %s7 = scalar_select 0, %s6, %s4
  $region1: #{tpu_custom_call.1} parent=0
    #allocation2 [shape = 'u8[8192]{0}', space=vmem, size = 0x2000, scoped, tag = 'input window, operand 0, single buffered']
    #allocation3 [shape = 's32[1]{0}', space=sflag, size = 0x4, scoped, tag = 'scoped memory for tpu_custom_call.1']
    #allocation4 [shape = 's32[1]{0}', space=sflag, size = 0x4, scoped, tag = 'scoped memory for tpu_custom_call.1']
    #allocation5 [shape = 'u8[16384]{0}', space=vmem, size = 0x4000, scoped, tag = 'input window, operand 1, single buffered']
    #allocation6 [shape = 's32[1]{0}', space=sflag, size = 0x4, scoped, tag = 'scoped memory for tpu_custom_call.1']
    #allocation7 [shape = 'u8[8192]{0}', space=vmem, size = 0x2000, scoped, tag = 'output window, operand 0, single buffered']
    %8 = vsyncpa [#allocation3], 0
    %9 = vsyncpa [#allocation6], 0
    %10 = vsyncpa [#allocation4], 0
    // Predicated region
    $region2: #{tpu_custom_call.1} parent=1 // pred_check
      _
    $region3: #{tpu_custom_call.1} parent=1 // pred_check_branch
      %12 = sbr.rel (0) target = $region5
    $region4: #{tpu_custom_call.1} parent=1 // pred_region
      %s14 = ssub.s32 256, 256
      %15 = vsyncadd [#allocation3], %s14
      %s16 = sshll.u32 [#allocation2], 4
      %s17 = int_to_ptr.vmem [resolvable:$true] %s16
      %22 = dma.hbm_to_vmem [thread:$0]  %s0, 256, %s17, [#allocation3], 128, 128, 8
    $region5: #{tpu_custom_call.1} parent=1 // pred_fallthru
      _
    // Predicated region
    $region6: #{tpu_custom_call.1} parent=1 // pred_check
      _
    $region7: #{tpu_custom_call.1} parent=1 // pred_check_branch
      %24 = sbr.rel (0) target = $region9
    $region8: #{tpu_custom_call.1} parent=1 // pred_region
      %s26 = ssub.s32 512, 512
      %27 = vsyncadd [#allocation6], %s26
      %s28 = sshll.u32 [#allocation5], 4
      %s29 = int_to_ptr.vmem [resolvable:$true] %s28
      %34 = dma.hbm_to_vmem [thread:$0]  %s1, 512, %s29, [#allocation6], 128, 128, 8
    $region9: #{tpu_custom_call.1} parent=1 // pred_fallthru
      _
    // Predicated region
    $region10: #{tpu_custom_call.1} parent=1 // pred_check
      _
    $region11: #{tpu_custom_call.1} parent=1 // pred_check_branch
      %36 = sbr.rel (0) target = $region13
    $region12: #{tpu_custom_call.1} parent=1 // pred_region
      _
    $region13: #{tpu_custom_call.1} parent=1 // pred_fallthru
      _
    // Predicated region
    $region14: #{tpu_custom_call.1} parent=1 // pred_check
      _
    $region15: #{tpu_custom_call.1} parent=1 // pred_check_branch
      %38 = sbr.rel (0) target = $region17
    $region16: #{tpu_custom_call.1} parent=1 // pred_region
      %39 = dma.done [#allocation3], 256
    $region17: #{tpu_custom_call.1} parent=1 // pred_fallthru
      _
    // Predicated region
    $region18: #{tpu_custom_call.1} parent=1 // pred_check
      _
    $region19: #{tpu_custom_call.1} parent=1 // pred_check_branch
      %41 = sbr.rel (0) target = $region21
    $region20: #{tpu_custom_call.1} parent=1 // pred_region
      %42 = dma.done [#allocation6], 512
    $region21: #{tpu_custom_call.1} parent=1 // pred_fallthru
      _
    %v43 = vld [vmem:[#allocation2] sm:$0xff]
    %v44 = vld [vmem:[#allocation2 + $0x8] sm:$0xff]
    %v45 = vld [vmem:[#allocation5] sm:$0xff]
    %v46 = vld [vmem:[#allocation5 + $0x8] sm:$0xff]
    %v47 = vld [vmem:[#allocation5 + $0x10] sm:$0xff]
    %v48 = vld [vmem:[#allocation5 + $0x18] sm:$0xff]
    %vm49 = vcmask 261120
    %v51 = vsel %vm49, %v43, 0
    %v54 = vsel %vm49, %v44, 0
    %56 = vmatprep.subr.mxu0 0.0
    %57 = vmatpush1.msra.mxu0 0.0
    %58 = vmatprep.subr.mxu0 0.0
    %59 = vmatpush1.msra.mxu0 0.0
    %60 = vmatprep.subr.mxu0 0.0
    %61 = vmatpush1.msra.mxu0 0.0
    %62 = vmatprep.subr.mxu0 0.0
    %63 = vmatpush1.msra.mxu0 0.0
    %64 = vmatprep.subr.mxu0 0.0
    %65 = vmatpush1.msra.mxu0 0.0
    %66 = vmatprep.subr.mxu0 0.0
    %67 = vmatpush1.msra.mxu0 0.0
    %68 = vmatprep.subr.mxu0 0.0
    %69 = vmatpush1.msra.mxu0 0.0
    %70 = vmatprep.subr.mxu0 0.0
    %71 = vmatpush1.msra.mxu0 0.0
    %72 = vmatprep.subr.mxu0 0.0
    %73 = vmatpush1.msra.mxu0 0.0
    %74 = vmatprep.subr.mxu0 0.0
    %75 = vmatpush1.msra.mxu0 0.0
    %76 = vmatprep.subr.mxu0 0.0
    %77 = vmatpush1.msra.mxu0 0.0
    %78 = vmatprep.subr.mxu0 0.0
    %79 = vmatpush1.msra.mxu0 0.0
    %80 = vmatprep.subr.mxu0 0.0
    %81 = vmatpush1.msra.mxu0 %v48
    %82 = vmatprep.subr.mxu0 0.0
    %83 = vmatpush1.msra.mxu0 %v47
    %84 = vmatprep.subr.mxu0 0.0
    %85 = vmatpush1.msra.mxu0 %v46
    %86 = vmatprep.subr.mxu0 0.0
    %87 = vmatpush1.msra.mxu0 %v45
    %88 = vmatprep.subr.mxu0 0.0
    %89 = vmatpush2.msra.mxu0 0.0
    %90 = vmatprep.subr.mxu0 0.0
    %91 = vmatpush2.msra.mxu0 0.0
    %92 = vmatprep.subr.mxu0 0.0
    %93 = vmatpush2.msra.mxu0 0.0
    %94 = vmatprep.subr.mxu0 0.0
    %95 = vmatpush2.msra.mxu0 0.0
    %96 = vmatprep.subr.mxu0 0.0
    %97 = vmatpush2.msra.mxu0 0.0
    %98 = vmatprep.subr.mxu0 0.0
    %99 = vmatpush2.msra.mxu0 0.0
    %100 = vmatprep.subr.mxu0 0.0
    %101 = vmatpush2.msra.mxu0 0.0
    %102 = vmatprep.subr.mxu0 0.0
    %103 = vmatpush2.msra.mxu0 0.0
    %104 = vmatprep.subr.mxu0 0.0
    %105 = vmatpush2.msra.mxu0 0.0
    %106 = vmatprep.subr.mxu0 0.0
    %107 = vmatpush2.msra.mxu0 0.0
    %108 = vmatprep.subr.mxu0 0.0
    %109 = vmatpush2.msra.mxu0 0.0
    %110 = vmatprep.subr.mxu0 0.0
    %111 = vmatpush2.msra.mxu0 0.0
    %112 = vmatprep.subr.mxu0 0.0
    %113 = vmatpush2.msra.mxu0 0.0
    %114 = vmatprep.subr.mxu0 0.0
    %115 = vmatpush2.msra.mxu0 0.0
    %116 = vmatprep.subr.mxu0 0.0
    %117 = vmatpush2.msra.mxu0 0.0
    %118 = vmatprep.subr.mxu0 0.0
    %119 = vmatpush2.msra.mxu0 0.0
    %120 = vmatprep.mubr.f32.mxu0 0.0
    %121 = vmatmul.mubr.f32.gmra.mxu0 %v51
    %v122 = vpop.f32.mrf.mxu0
    %v123 = vadd.f32 0.0, %v122
    %v124 = vpop.f32.mrf.mxu0
    %125 = vmatprep.mubr.f32.mxu0 0.0
    %126 = vmatmul.mubr.f32.gmra.mxu0 %v54
    %v127 = vpop.f32.mrf.mxu0
    %v128 = vadd.f32 0.0, %v127
    %v129 = vpop.f32.mrf.mxu0
    %130 = vdwg.mxu0
    %v131 = vxor.u32 %v123, 2147483648
    %v132 = vxor.u32 %v128, 2147483648
    %v133 = vmul.f32 %v131, 1.442695
    %v134 = vpow.pop %v133
    %v135 = vmul.f32 %v132, 1.442695
    %v136 = vpow.pop %v135
    %v137 = vadd.f32 %v134, 1.0
    %v138 = vadd.f32 %v136, 1.0
    %v139 = vrcp.pop %v137
    %v140 = vmul.f32 1.0, %v139
    %v141 = vrcp.pop %v138
    %v142 = vmul.f32 1.0, %v141
    %v143 = vadd.f32 %v140, %v43
    %v144 = vadd.f32 %v142, %v44
    %145 = vst.msk [vmem:[#allocation7] sm:$0xff] %vm49, %v143
    %146 = vst.msk [vmem:[#allocation7 + $0x8] sm:$0xff] %vm49, %v144
    // Predicated region
    $region22: #{tpu_custom_call.1} parent=1 // pred_check
      _
    $region23: #{tpu_custom_call.1} parent=1 // pred_check_branch
      %148 = sbr.rel (0) target = $region25
    $region24: #{tpu_custom_call.1} parent=1 // pred_region
      %s150 = ssub.s32 256, 256
      %151 = vsyncadd [#allocation4], %s150
      %s152 = sshll.u32 [#allocation7], 4
      %s153 = int_to_ptr.vmem [resolvable:$true] %s152
      %158 = dma.vmem_to_hbm [thread:$0]  %s153, 256, %s3, [#allocation4], 128, 128, 8
    $region25: #{tpu_custom_call.1} parent=1 // pred_fallthru
      _
    // Predicated region
    $region26: #{tpu_custom_call.1} parent=1 // pred_check
      _
    $region27: #{tpu_custom_call.1} parent=1 // pred_check_branch
      %160 = sbr.rel (0) target = $region29
    $region28: #{tpu_custom_call.1} parent=1 // pred_region
      %161 = dma.done [#allocation4], 256
    $region29: #{tpu_custom_call.1} parent=1 // pred_fallthru
      _
    %162 = vsyncpa [#allocation3], 1
    %163 = vsyncpa [#allocation6], 1
    %164 = vsyncpa [#allocation4], 1

</llo_original>
